<compile_context>
chip_gen: v6e
topology: v6e:2x2x1
jax: 0.10.0
libtpu: 0.0.40
codegen_flags: <defaults>
</compile_context>

<pallas_src>
import functools

import numpy as np
import jax
import jax.numpy as jnp
from jax.experimental import pallas as pl
from jax.experimental.pallas import tpu as pltpu

_EPS = 1e-8


def _round_up(x, m):
    return (x + m - 1) // m * m


def _encoder_kernel(x_ref, wt_ref, b_ref, sel_ref, feat_ref, mean_ref, *scratch,
                    nk, no_imgnorm):
    # x_ref:    (m_tile, tk)  f32  image-region rows (streamed; cast to bf16 here)
    # wt_ref:   (Dp, Ep)      bf16 fc weight, pre-transposed, VMEM-resident (DMA'd once)
    # b_ref:    (1, Ep)       f32  fc bias
    # sel_ref:  (tb, m_tile)  f32  region-mean selector (1/R over each element's rows)
    # feat_ref: (m_tile, Ep)  f32  l2-normalized features (written once, last K step)
    # mean_ref: (tb, Ep)      f32  per-batch-element mean over regions
    # scratch:  [(m_tile, Ep) f32] accumulator, only allocated when nk > 1
    tk = x_ref.shape[1]
    x = x_ref[...].astype(jnp.bfloat16)          # in-kernel cast: no extra HBM pass

    def psum_for(k):
        if nk == 1:
            w = wt_ref[...]
        else:
            k0 = pl.multiple_of(k * tk, tk)
            w = wt_ref[pl.ds(k0, tk), :]         # K-slab of the resident weight
        return jnp.dot(x, w, preferred_element_type=jnp.float32)

    def epilogue(f):
        if not no_imgnorm:
            ss = jnp.sum(f * f, axis=-1, keepdims=True)
            # VSE l2norm: x / (sqrt(ss) + eps); reciprocal on the EUP.
            f = f * pl.reciprocal(jnp.sqrt(ss) + _EPS, approx=True)
        feat_ref[...] = f                        # single lane-dense store
        # Region mean as a small MXU matmul (avoids reshape/relayout in the epilogue).
        mean_ref[...] = jnp.dot(sel_ref[...], f, preferred_element_type=jnp.float32)

    if nk == 1:
        # Single K block: bias added directly, no accumulator scratch needed.
        epilogue(psum_for(0) + b_ref[...])
        return

    acc_ref = scratch[0]
    k = pl.program_id(1)
    psum = psum_for(k)

    @pl.when(k == 0)
    def _():
        acc_ref[...] = psum + b_ref[...]         # seed with bias (no zero-init pass)

    @pl.when(jnp.logical_and(k > 0, k < nk - 1))
    def _():
        acc_ref[...] = acc_ref[...] + psum

    @pl.when(k == nk - 1)
    def _():
        epilogue(acc_ref[...] + psum)


def encoder_image_precomp(images, weight, bias, no_imgnorm=False, *,
                          batch_tile=None, max_k_tile=2048):
    """images: (B, R, D) f32; weight: (E, D) PyTorch layout; bias: (E,)."""
    B, R, D = images.shape
    E = weight.shape[0]

    Dp = _round_up(D, 128)
    Ep = _round_up(E, 128)

    # ---- batch (M) tiling: target ~512 rows per step, keep >=2 tiles when B allows
    if batch_tile is None:
        batch_tile = max(1, 512 // max(R, 1))
    batch_tile = max(1, min(batch_tile, B))
    if batch_tile < B:
        # Strict sub-blocks -> mean-block sublane dim (and m_tile) must be /8.
        batch_tile = min(_round_up(batch_tile, 8), _round_up(B, 8))
    Bp = _round_up(B, batch_tile)
    nb = Bp // batch_tile
    m_tile = batch_tile * R

    # ---- K tiling (only for very large D; weight itself stays fully resident)
    if Dp <= max_k_tile:
        tk = Dp
    else:
        tk = next(c for c in (2048, 1024, 512, 256, 128)
                  if c <= max_k_tile and Dp % c == 0)
    nk = Dp // tk

    # ---- host-side one-time prep (pads compile away for already-aligned dims)
    x2 = images
    if (Bp, Dp) != (B, D):
        x2 = jnp.pad(x2, ((0, Bp - B), (0, 0), (0, Dp - D)))
    x2 = x2.reshape(Bp * R, Dp)                              # f32; cast in-kernel

    w = weight
    if (Ep, Dp) != (E, D):
        w = jnp.pad(w, ((0, Ep - E), (0, Dp - D)))
    wt = w.T.astype(jnp.bfloat16)                            # (Dp, Ep), one-time
    b2 = (jnp.pad(bias, (0, Ep - E)) if Ep != E else bias)
    b2 = b2.reshape(1, Ep).astype(jnp.float32)

    sel_np = np.zeros((batch_tile, m_tile), np.float32)      # region-mean selector
    for bi in range(batch_tile):
        sel_np[bi, bi * R:(bi + 1) * R] = 1.0 / R
    sel = jnp.asarray(sel_np)

    # ---- explicit VMEM budget (resident weight counted at 2 buffers, conservative)
    est = (2 * Dp * Ep * 2
           + 2 * m_tile * tk * 4
           + 2 * m_tile * Ep * 4
           + 2 * batch_tile * Ep * 4
           + 2 * Ep * 4
           + 2 * batch_tile * m_tile * 4
           + (m_tile * Ep * 4 if nk > 1 else 0))
    vmem_limit = int(min(max(2 * est + (4 << 20), 32 << 20), 60 << 20))

    kernel = functools.partial(_encoder_kernel, nk=nk, no_imgnorm=no_imgnorm)
    scratch = [pltpu.VMEM((m_tile, Ep), jnp.float32)] if nk > 1 else []

    grid_spec = pltpu.PrefetchScalarGridSpec(
        num_scalar_prefetch=0,
        grid=(nb, nk),
        in_specs=[
            pl.BlockSpec((m_tile, tk), lambda i, k: (i, k)),        # images (streamed)
            pl.BlockSpec((Dp, Ep), lambda i, k: (0, 0)),            # weight^T (resident)
            pl.BlockSpec((1, Ep), lambda i, k: (0, 0)),             # bias
            pl.BlockSpec((batch_tile, m_tile), lambda i, k: (0, 0)),  # mean selector
        ],
        out_specs=[
            pl.BlockSpec((m_tile, Ep), lambda i, k: (i, 0)),        # features
            pl.BlockSpec((batch_tile, Ep), lambda i, k: (i, 0)),    # features_mean
        ],
        scratch_shapes=scratch,
    )

    feat2, mean = pl.pallas_call(
        kernel,
        out_shape=(
            jax.ShapeDtypeStruct((Bp * R, Ep), jnp.float32),
            jax.ShapeDtypeStruct((Bp, Ep), jnp.float32),
        ),
        grid_spec=grid_spec,
        compiler_params=pltpu.CompilerParams(
            dimension_semantics=("parallel", "arbitrary"),
            vmem_limit_bytes=vmem_limit),
    )(x2, wt, b2, sel)

    features = feat2.reshape(Bp, R, Ep)[:B, :, :E]
    features_mean = mean[:B, :E]
    return features, features_mean


def _reference(images, weight, bias, no_imgnorm=False):
    # Reference matches the kernel's bf16-operand / f32-accumulate matmul.
    f = jnp.einsum("brd,ed->bre",
                   images.astype(jnp.bfloat16), weight.astype(jnp.bfloat16),
                   preferred_element_type=jnp.float32) + bias
    if not no_imgnorm:
        norm = jnp.sqrt(jnp.sum(f * f, axis=-1, keepdims=True)) + _EPS
        f = f / norm
    return f, jnp.mean(f, axis=1)


if __name__ == "__main__":
    def run_case(B, R, D, E, **kw):
        key = jax.random.PRNGKey(0)
        k_img, k_w, k_b = jax.random.split(key, 3)
        images = jax.random.normal(k_img, (B, R, D), dtype=jnp.float32)
        # Xavier init as in init_weights(); bias made nonzero to exercise the
        # bias path (the forward does not depend on init values).
        r = np.sqrt(6.0) / np.sqrt(D + E)
        weight = jax.random.uniform(k_w, (E, D), dtype=jnp.float32,
                                    minval=-r, maxval=r)
        bias = 0.01 * jax.random.normal(k_b, (E,), dtype=jnp.float32)

        feats, fmean = encoder_image_precomp(images, weight, bias, **kw)
        jax.block_until_ready((feats, fmean))

        ref_f, ref_m = _reference(images, weight, bias)
        np.testing.assert_allclose(np.asarray(feats), np.asarray(ref_f),
                                   rtol=1e-2, atol=1e-2)
        np.testing.assert_allclose(np.asarray(fmean), np.asarray(ref_m),
                                   rtol=1e-2, atol=1e-2)

    # Small non-128-aligned shapes: padding path, single batch tile, single K block.
    run_case(B=4, R=8, D=48, E=40)
    # Multi-batch-tile + K-tiled accumulator path (nb=2, nk=2) at small cost.
    run_case(B=10, R=4, D=200, E=72, batch_tile=8, max_k_tile=128)

    print("KERNEL_OK")
</pallas_src>

<mosaic_0001>
module attributes {stable_mosaic.version = 11 : i64} {
  func.func @_encoder_kernel(%arg0: i32, %arg1: i32, %arg2: memref<32x128xf32, #tpu.memory_space<vmem>>, %arg3: memref<128x128xbf16, #tpu.memory_space<vmem>>, %arg4: memref<1x128xf32, #tpu.memory_space<vmem>>, %arg5: memref<4x32xf32, #tpu.memory_space<vmem>>, %arg6: memref<32x128xf32, #tpu.memory_space<vmem>>, %arg7: memref<4x128xf32, #tpu.memory_space<vmem>>) attributes {dimension_semantics = [#tpu.dimension_semantics<parallel>, #tpu.dimension_semantics<arbitrary>], iteration_bounds = array<i64: 1, 1>, scalar_prefetch = 0 : i64, scratch_operands = 0 : i64, tpu.core_type = #tpu.core_type<tc>, window_params = [{transform_indices = @transform_0, window_bounds = array<i64: 32, 128>}, {pipeline_mode = #tpu.pipeline_mode<synchronous>, transform_indices = @transform_1, window_bounds = array<i64: 128, 128>}, {pipeline_mode = #tpu.pipeline_mode<synchronous>, transform_indices = @transform_2, window_bounds = array<i64: 1, 128>}, {pipeline_mode = #tpu.pipeline_mode<synchronous>, transform_indices = @transform_3, window_bounds = array<i64: 4, 32>}, {transform_indices = @transform_4, window_bounds = array<i64: 32, 128>}, {transform_indices = @transform_5, window_bounds = array<i64: 4, 128>}]} {
    %c0 = arith.constant 0 : index
    %c0_0 = arith.constant 0 : index
    %0 = vector.load %arg2[%c0, %c0_0] : memref<32x128xf32, #tpu.memory_space<vmem>>, vector<32x128xf32>
    %1 = arith.truncf %0 : vector<32x128xf32> to vector<32x128xbf16>
    %c0_1 = arith.constant 0 : index
    %c0_2 = arith.constant 0 : index
    %2 = vector.load %arg3[%c0_1, %c0_2] : memref<128x128xbf16, #tpu.memory_space<vmem>>, vector<128x128xbf16>
    %cst = arith.constant dense<0.000000e+00> : vector<32x128xf32>
    %3 = tpu.matmul %1, %2, %cst {dimension_numbers = #tpu.dot_dimension_numbers<[1], [0], [0], [1], [0, 0, 1, 1], [], []>} : vector<32x128xbf16>, vector<128x128xbf16>, vector<32x128xf32> -> vector<32x128xf32>
    %c0_3 = arith.constant 0 : index
    %c0_4 = arith.constant 0 : index
    %4 = vector.load %arg4[%c0_3, %c0_4] : memref<1x128xf32, #tpu.memory_space<vmem>>, vector<1x128xf32>
    %5 = vector.broadcast %4 : vector<1x128xf32> to vector<32x128xf32>
    %6 = arith.addf %3, %5 : vector<32x128xf32>
    %7 = arith.mulf %6, %6 : vector<32x128xf32>
    %cst_5 = arith.constant dense<0.000000e+00> : vector<32xf32>
    %8 = vector.multi_reduction <add>, %7, %cst_5 [1] : vector<32x128xf32> to vector<32xf32>
    %9 = vector.shape_cast %8 : vector<32xf32> to vector<32x1xf32>
    %10 = math.sqrt %9 : vector<32x1xf32>
    %cst_6 = arith.constant 9.99999993E-9 : f32
    %11 = vector.broadcast %cst_6 : f32 to vector<32x1xf32>
    %12 = arith.addf %10, %11 : vector<32x1xf32>
    %13 = tpu.reciprocal %12 {approx = true} : vector<32x1xf32> -> vector<32x1xf32>
    %14 = vector.broadcast %13 : vector<32x1xf32> to vector<32x128xf32>
    %15 = arith.mulf %6, %14 : vector<32x128xf32>
    %c0_7 = arith.constant 0 : index
    %c0_8 = arith.constant 0 : index
    %16 = vector.load %arg6[%c0_7, %c0_8] : memref<32x128xf32, #tpu.memory_space<vmem>>, vector<32x128xf32>
    tpu.vector_store %arg6[%c0_7, %c0_8], %15 {strides = array<i32>} : memref<32x128xf32, #tpu.memory_space<vmem>>, vector<32x128xf32>,
    %c0_9 = arith.constant 0 : index
    %c0_10 = arith.constant 0 : index
    %17 = vector.load %arg5[%c0_9, %c0_10] : memref<4x32xf32, #tpu.memory_space<vmem>>, vector<4x32xf32>
    %cst_11 = arith.constant dense<0.000000e+00> : vector<4x128xf32>
    %18 = tpu.matmul %17, %15, %cst_11 {dimension_numbers = #tpu.dot_dimension_numbers<[1], [0], [0], [1], [0, 0, 1, 1], [], []>} : vector<4x32xf32>, vector<32x128xf32>, vector<4x128xf32> -> vector<4x128xf32>
    %c0_12 = arith.constant 0 : index
    %c0_13 = arith.constant 0 : index
    %19 = vector.load %arg7[%c0_12, %c0_13] : memref<4x128xf32, #tpu.memory_space<vmem>>, vector<4x128xf32>
    tpu.vector_store %arg7[%c0_12, %c0_13], %18 {strides = array<i32>} : memref<4x128xf32, #tpu.memory_space<vmem>>, vector<4x128xf32>,
    return
  }
  func.func @transform_0(%arg0: i32, %arg1: i32) -> (i32, i32) {
    %c0_i32 = arith.constant 0 : i32
    return %arg0, %arg1 : i32, i32
  }
  func.func @transform_1(%arg0: i32, %arg1: i32) -> (i32, i32) {
    %c0_i32 = arith.constant 0 : i32
    %c0_i32_0 = arith.constant 0 : i32
    %c0_i32_1 = arith.constant 0 : i32
    return %c0_i32, %c0_i32_0 : i32, i32
  }
  func.func @transform_2(%arg0: i32, %arg1: i32) -> (i32, i32) {
    %c0_i32 = arith.constant 0 : i32
    %c0_i32_0 = arith.constant 0 : i32
    %c0_i32_1 = arith.constant 0 : i32
    return %c0_i32, %c0_i32_0 : i32, i32
  }
  func.func @transform_3(%arg0: i32, %arg1: i32) -> (i32, i32) {
    %c0_i32 = arith.constant 0 : i32
    %c0_i32_0 = arith.constant 0 : i32
    %c0_i32_1 = arith.constant 0 : i32
    return %c0_i32, %c0_i32_0 : i32, i32
  }
  func.func @transform_4(%arg0: i32, %arg1: i32) -> (i32, i32) {
    %c0_i32 = arith.constant 0 : i32
    %c0_i32_0 = arith.constant 0 : i32
    return %arg0, %c0_i32 : i32, i32
  }
  func.func @transform_5(%arg0: i32, %arg1: i32) -> (i32, i32) {
    %c0_i32 = arith.constant 0 : i32
    %c0_i32_0 = arith.constant 0 : i32
    return %arg0, %c0_i32 : i32, i32
  }
}

</mosaic_0001>

<llo_original>
// kernel: tpu_custom_call.1
$region0: #{tpu_custom_call.1}
  #allocation0 [shape = 'u32[]', space=smem, size = 0x4, offset = 0x4, fixed_abs, tag = 'smem constant byte address 0x4 - core index']
  #allocation1 [shape = 'u32[144,128]{1,0:T(1,128)}', space=vmem, size = 0x12000, scoped, tag = 'internal scratch']
  %s0 = inlined_call_operand.hbm [shape: f32[32,128], index: 0, kind: input, shape index: {}]
  %s1 = inlined_call_operand.hbm [shape: bf16[128,128], index: 1, kind: input, shape index: {}]
  %s2 = inlined_call_operand.vmem [shape: f32[1,128], index: 2, kind: input, shape index: {}]
  %s3 = inlined_call_operand.vmem [shape: f32[4,32], index: 3, kind: input, shape index: {}]
  %s4 = inlined_call_operand.hbm [shape: f32[32,128], index: 4, kind: output, shape index: {0}]
  %s5 = inlined_call_operand.hbm [shape: f32[4,128], index: 5, kind: output, shape index: {1}]
  %6 = xla_tuple %s4, %s5
  %s7 = sld [smem:[#allocation0]]
  $region42: #{tpu_custom_call.1} parent=0
    _
  %s9 = ssub.s32 1, %s7
  %s10 = scalar_select 0, %s9, %s7
  $region1: #{tpu_custom_call.1} parent=0
    #allocation2 [shape = 'u8[16384]{0}', space=vmem, size = 0x4000, scoped, tag = 'input window, operand 0, single buffered']
    #allocation3 [shape = 's32[1]{0}', space=sflag, size = 0x4, scoped, tag = 'scoped memory for tpu_custom_call.1']
    #allocation4 [shape = 's32[1]{0}', space=sflag, size = 0x4, scoped, tag = 'scoped memory for tpu_custom_call.1']
    #allocation5 [shape = 'u8[32768]{0}', space=vmem, size = 0x8000, scoped, tag = 'input window, operand 1, single buffered']
    #allocation6 [shape = 's32[1]{0}', space=sflag, size = 0x4, scoped, tag = 'scoped memory for tpu_custom_call.1']
    #allocation7 [shape = 'u8[16384]{0}', space=vmem, size = 0x4000, scoped, tag = 'output window, operand 0, single buffered']
    #allocation8 [shape = 'u8[2048]{0}', space=vmem, size = 0x800, scoped, tag = 'output window, operand 1, single buffered']
    #allocation9 [shape = 's32[1]{0}', space=sflag, size = 0x4, scoped, tag = 'scoped memory for tpu_custom_call.1']
    %11 = vsyncpa [#allocation3], 0
    %12 = vsyncpa [#allocation6], 0
    %13 = vsyncpa [#allocation4], 0
    %14 = vsyncpa [#allocation9], 0
    // Predicated region
    $region2: #{tpu_custom_call.1} parent=1 // pred_check
      _
    $region3: #{tpu_custom_call.1} parent=1 // pred_check_branch
      %16 = sbr.rel (0) target = $region5
    $region4: #{tpu_custom_call.1} parent=1 // pred_region
      %s18 = ssub.s32 512, 512
      %19 = vsyncadd [#allocation3], %s18
      %s20 = sshll.u32 [#allocation2], 4
      %s21 = int_to_ptr.vmem [resolvable:$true] %s20
      %26 = dma.hbm_to_vmem [thread:$0]  %s0, 512, %s21, [#allocation3], 128, 128, 8
    $region5: #{tpu_custom_call.1} parent=1 // pred_fallthru
      _
    // Predicated region
    $region6: #{tpu_custom_call.1} parent=1 // pred_check
      _
    $region7: #{tpu_custom_call.1} parent=1 // pred_check_branch
      %28 = sbr.rel (0) target = $region9
    $region8: #{tpu_custom_call.1} parent=1 // pred_region
      %s30 = ssub.s32 1024, 1024
      %31 = vsyncadd [#allocation6], %s30
      %s32 = sshll.u32 [#allocation5], 4
      %s33 = int_to_ptr.vmem [resolvable:$true] %s32
      %38 = dma.hbm_to_vmem [thread:$0]  %s1, 1024, %s33, [#allocation6], 64, 64, 4
    $region9: #{tpu_custom_call.1} parent=1 // pred_fallthru
      _
    // Predicated region
    $region10: #{tpu_custom_call.1} parent=1 // pred_check
      _
    $region11: #{tpu_custom_call.1} parent=1 // pred_check_branch
      %40 = sbr.rel (0) target = $region13
    $region12: #{tpu_custom_call.1} parent=1 // pred_region
      _
    $region13: #{tpu_custom_call.1} parent=1 // pred_fallthru
      _
    // Predicated region
    $region14: #{tpu_custom_call.1} parent=1 // pred_check
      _
    $region15: #{tpu_custom_call.1} parent=1 // pred_check_branch
      %42 = sbr.rel (0) target = $region17
    $region16: #{tpu_custom_call.1} parent=1 // pred_region
      _
    $region17: #{tpu_custom_call.1} parent=1 // pred_fallthru
      _
    // Predicated region
    $region18: #{tpu_custom_call.1} parent=1 // pred_check
      _
    $region19: #{tpu_custom_call.1} parent=1 // pred_check_branch
      %44 = sbr.rel (0) target = $region21
    $region20: #{tpu_custom_call.1} parent=1 // pred_region
      %45 = dma.done [#allocation3], 512
    $region21: #{tpu_custom_call.1} parent=1 // pred_fallthru
      _
    // Predicated region
    $region22: #{tpu_custom_call.1} parent=1 // pred_check
      _
    $region23: #{tpu_custom_call.1} parent=1 // pred_check_branch
      %47 = sbr.rel (0) target = $region25
    $region24: #{tpu_custom_call.1} parent=1 // pred_region
      %48 = dma.done [#allocation6], 1024
    $region25: #{tpu_custom_call.1} parent=1 // pred_fallthru
      _
    %v50 = vld [vmem:[#allocation2] sm:$0xff]
    %v51 = vld [vmem:[#allocation2 + $0x8] sm:$0xff]
    %v52 = vld [vmem:[#allocation2 + $0x10] sm:$0xff]
    %v53 = vld [vmem:[#allocation2 + $0x18] sm:$0xff]
    %v54 = vpack.c.bf16 %v51, %v50
    %v55 = vpack.c.bf16 %v53, %v52
    %v56 = vld [vmem:[#allocation5] sm:$0xf]
    %v57 = vld [vmem:[#allocation5 + $0x4] sm:$0xf]
    %v58 = vld [vmem:[#allocation5 + $0x8] sm:$0xf]
    %v59 = vld [vmem:[#allocation5 + $0xc] sm:$0xf]
    %v60 = vld [vmem:[#allocation5 + $0x10] sm:$0xf]
    %v61 = vld [vmem:[#allocation5 + $0x14] sm:$0xf]
    %v62 = vld [vmem:[#allocation5 + $0x18] sm:$0xf]
    %v63 = vld [vmem:[#allocation5 + $0x1c] sm:$0xf]
    %v64 = vld [vmem:[#allocation5 + $0x20] sm:$0xf]
    %v65 = vld [vmem:[#allocation5 + $0x24] sm:$0xf]
    %v66 = vld [vmem:[#allocation5 + $0x28] sm:$0xf]
    %v67 = vld [vmem:[#allocation5 + $0x2c] sm:$0xf]
    %v68 = vld [vmem:[#allocation5 + $0x30] sm:$0xf]
    %v69 = vld [vmem:[#allocation5 + $0x34] sm:$0xf]
    %v70 = vld [vmem:[#allocation5 + $0x38] sm:$0xf]
    %v71 = vld [vmem:[#allocation5 + $0x3c] sm:$0xf]
    %v72 = vld [vmem:[%s2] sm:$0x1]
    %v74 = vlaneseq
    %v75 = vshrl.u32 %v74, 7
    %v76 = vsub.s32 0, %v75
    %v77 = vrot.slane %v72, %v76
    %v95 = vunpack.c.l.b16 %v56
    %v96 = vunpack.c.l.b16 %v57
    %v97 = vunpack.c.l.b16 %v58
    %v98 = vunpack.c.l.b16 %v59
    %v99 = vunpack.c.l.b16 %v60
    %v100 = vunpack.c.l.b16 %v61
    %v101 = vunpack.c.l.b16 %v62
    %v102 = vunpack.c.l.b16 %v63
    %v103 = vunpack.c.l.b16 %v64
    %v104 = vunpack.c.l.b16 %v65
    %v105 = vunpack.c.l.b16 %v66
    %v106 = vunpack.c.l.b16 %v67
    %v107 = vunpack.c.l.b16 %v68
    %v108 = vunpack.c.l.b16 %v69
    %v109 = vunpack.c.l.b16 %v70
    %v110 = vunpack.c.l.b16 %v71
    %v111 = vpack.c.b16 %v96, %v95
    %v112 = vpack.c.b16 %v98, %v97
    %v113 = vpack.c.b16 %v100, %v99
    %v114 = vpack.c.b16 %v102, %v101
    %v115 = vpack.c.b16 %v104, %v103
    %v116 = vpack.c.b16 %v106, %v105
    %v117 = vpack.c.b16 %v108, %v107
    %v118 = vpack.c.b16 %v110, %v109
    %127 = vmatprep.subr.bf16.mxu0 0
    %128 = vmatpush1.bf16.msra.mxu0 %v118
    %129 = vmatprep.subr.bf16.mxu0 0
    %130 = vmatpush1.bf16.msra.mxu0 %v117
    %131 = vmatprep.subr.bf16.mxu0 0
    %132 = vmatpush1.bf16.msra.mxu0 %v116
    %133 = vmatprep.subr.bf16.mxu0 0
    %134 = vmatpush1.bf16.msra.mxu0 %v115
    %135 = vmatprep.subr.bf16.mxu0 0
    %136 = vmatpush1.bf16.msra.mxu0 %v114
    %137 = vmatprep.subr.bf16.mxu0 0
    %138 = vmatpush1.bf16.msra.mxu0 %v113
    %139 = vmatprep.subr.bf16.mxu0 0
    %140 = vmatpush1.bf16.msra.mxu0 %v112
    %141 = vmatprep.subr.bf16.mxu0 0
    %142 = vmatpush1.bf16.msra.mxu0 %v111
    %143 = vmatprep.subr.bf16.mxu0 0
    %144 = vmatpush2.bf16.msra.mxu0 0
    %145 = vmatprep.subr.bf16.mxu0 0
    %146 = vmatpush2.bf16.msra.mxu0 0
    %147 = vmatprep.subr.bf16.mxu0 0
    %148 = vmatpush2.bf16.msra.mxu0 0
    %149 = vmatprep.subr.bf16.mxu0 0
    %150 = vmatpush2.bf16.msra.mxu0 0
    %151 = vmatprep.subr.bf16.mxu0 0
    %152 = vmatpush2.bf16.msra.mxu0 0
    %153 = vmatprep.subr.bf16.mxu0 0
    %154 = vmatpush2.bf16.msra.mxu0 0
    %155 = vmatprep.subr.bf16.mxu0 0
    %156 = vmatpush2.bf16.msra.mxu0 0
    %157 = vmatprep.subr.bf16.mxu0 0
    %158 = vmatpush2.bf16.msra.mxu0 0
    %159 = vmatprep.mubr.bf16.mxu0 0
    %160 = vmatmul.mubr.bf16.gmra.mxu0 %v54
    %v161 = vpop.f32.mrf.mxu0
    %v162 = vadd.f32 %v77, %v161
    %v163 = vpop.f32.mrf.mxu0
    %v164 = vpop.f32.mrf.mxu0
    %v165 = vadd.f32 %v77, %v164
    %v166 = vpop.f32.mrf.mxu0
    %167 = vmatprep.mubr.bf16.mxu0 0
    %168 = vmatmul.mubr.bf16.gmra.mxu0 %v55
    %v169 = vpop.f32.mrf.mxu0
    %v170 = vadd.f32 %v77, %v169
    %v171 = vpop.f32.mrf.mxu0
    %v172 = vpop.f32.mrf.mxu0
    %v173 = vadd.f32 %v77, %v172
    %v174 = vpop.f32.mrf.mxu0
    %175 = vdwg.mxu0
    %v176 = vmul.f32 %v162, %v162
    %v177 = vmul.f32 %v165, %v165
    %v178 = vmul.f32 %v170, %v170
    %v179 = vmul.f32 %v173, %v173
    %180 = vadd.xlane.f32.xlu0 %v176
    %v181 = vpop.xlane.xlu0 %180
    %182 = vadd.xlane.f32.xlu0 %v177
    %v183 = vpop.xlane.xlu0 %182
    %184 = vadd.xlane.f32.xlu0 %v178
    %v185 = vpop.xlane.xlu0 %184
    %186 = vadd.xlane.f32.xlu0 %v179
    %v187 = vpop.xlane.xlu0 %186
    %v188 = vrsqrt.pop %v181
    %v189 = vmul.f32 %v181, %v188
    %vm190 = vcmp.eq.f32.partialorder %v181, inf
    %v191 = vsel %vm190, %v181, %v189
    %vm192 = vcmp.eq.f32.partialorder %v181, 0.0
    %v193 = vand.u32 %v181, 2147483648
    %v194 = vsel %vm192, %v193, %v191
    %v195 = vrsqrt.pop %v183
    %v196 = vmul.f32 %v183, %v195
    %vm197 = vcmp.eq.f32.partialorder %v183, inf
    %v198 = vsel %vm197, %v183, %v196
    %vm199 = vcmp.eq.f32.partialorder %v183, 0.0
    %v200 = vand.u32 %v183, 2147483648
    %v201 = vsel %vm199, %v200, %v198
    %v202 = vrsqrt.pop %v185
    %v203 = vmul.f32 %v185, %v202
    %vm204 = vcmp.eq.f32.partialorder %v185, inf
    %v205 = vsel %vm204, %v185, %v203
    %vm206 = vcmp.eq.f32.partialorder %v185, 0.0
    %v207 = vand.u32 %v185, 2147483648
    %v208 = vsel %vm206, %v207, %v205
    %v209 = vrsqrt.pop %v187
    %v210 = vmul.f32 %v187, %v209
    %vm211 = vcmp.eq.f32.partialorder %v187, inf
    %v212 = vsel %vm211, %v187, %v210
    %vm213 = vcmp.eq.f32.partialorder %v187, 0.0
    %v214 = vand.u32 %v187, 2147483648
    %v215 = vsel %vm213, %v214, %v212
    %v216 = vadd.f32 %v194, 1e-08
    %v217 = vadd.f32 %v201, 1e-08
    %v218 = vadd.f32 %v208, 1e-08
    %v219 = vadd.f32 %v215, 1e-08
    %v220 = vrcp.pop %v216
    %v221 = vrcp.pop %v217
    %v222 = vrcp.pop %v218
    %v223 = vrcp.pop %v219
    %v224 = vmul.f32 %v162, %v220
    %v225 = vmul.f32 %v165, %v221
    %v226 = vmul.f32 %v170, %v222
    %v227 = vmul.f32 %v173, %v223
    %228 = vst [vmem:[#allocation7] sm:$0xff] %v224
    %229 = vst [vmem:[#allocation7 + $0x8] sm:$0xff] %v225
    %230 = vst [vmem:[#allocation7 + $0x10] sm:$0xff] %v226
    %231 = vst [vmem:[#allocation7 + $0x18] sm:$0xff] %v227
    %v232 = vld [vmem:[%s3] sm:$0xf]
    %vm233 = vcmask 261120
    %v235 = vsel %vm233, %v232, 0
    %237 = vmatprep.subr.mxu0 0.0
    %238 = vmatpush1.msra.mxu0 0.0
    %239 = vmatprep.subr.mxu0 0.0
    %240 = vmatpush1.msra.mxu0 0.0
    %241 = vmatprep.subr.mxu0 0.0
    %242 = vmatpush1.msra.mxu0 0.0
    %243 = vmatprep.subr.mxu0 0.0
    %244 = vmatpush1.msra.mxu0 0.0
    %245 = vmatprep.subr.mxu0 0.0
    %246 = vmatpush1.msra.mxu0 0.0
    %247 = vmatprep.subr.mxu0 0.0
    %248 = vmatpush1.msra.mxu0 0.0
    %249 = vmatprep.subr.mxu0 0.0
    %250 = vmatpush1.msra.mxu0 0.0
    %251 = vmatprep.subr.mxu0 0.0
    %252 = vmatpush1.msra.mxu0 0.0
    %253 = vmatprep.subr.mxu0 0.0
    %254 = vmatpush1.msra.mxu0 0.0
    %255 = vmatprep.subr.mxu0 0.0
    %256 = vmatpush1.msra.mxu0 0.0
    %257 = vmatprep.subr.mxu0 0.0
    %258 = vmatpush1.msra.mxu0 0.0
    %259 = vmatprep.subr.mxu0 0.0
    %260 = vmatpush1.msra.mxu0 0.0
    %261 = vmatprep.subr.mxu0 0.0
    %262 = vmatpush1.msra.mxu0 %v227
    %263 = vmatprep.subr.mxu0 0.0
    %264 = vmatpush1.msra.mxu0 %v226
    %265 = vmatprep.subr.mxu0 0.0
    %266 = vmatpush1.msra.mxu0 %v225
    %267 = vmatprep.subr.mxu0 0.0
    %268 = vmatpush1.msra.mxu0 %v224
    %269 = vmatprep.subr.mxu0 0.0
    %270 = vmatpush2.msra.mxu0 0.0
    %271 = vmatprep.subr.mxu0 0.0
    %272 = vmatpush2.msra.mxu0 0.0
    %273 = vmatprep.subr.mxu0 0.0
    %274 = vmatpush2.msra.mxu0 0.0
    %275 = vmatprep.subr.mxu0 0.0
    %276 = vmatpush2.msra.mxu0 0.0
    %277 = vmatprep.subr.mxu0 0.0
    %278 = vmatpush2.msra.mxu0 0.0
    %279 = vmatprep.subr.mxu0 0.0
    %280 = vmatpush2.msra.mxu0 0.0
    %281 = vmatprep.subr.mxu0 0.0
    %282 = vmatpush2.msra.mxu0 0.0
    %283 = vmatprep.subr.mxu0 0.0
    %284 = vmatpush2.msra.mxu0 0.0
    %285 = vmatprep.subr.mxu0 0.0
    %286 = vmatpush2.msra.mxu0 0.0
    %287 = vmatprep.subr.mxu0 0.0
    %288 = vmatpush2.msra.mxu0 0.0
    %289 = vmatprep.subr.mxu0 0.0
    %290 = vmatpush2.msra.mxu0 0.0
    %291 = vmatprep.subr.mxu0 0.0
    %292 = vmatpush2.msra.mxu0 0.0
    %293 = vmatprep.subr.mxu0 0.0
    %294 = vmatpush2.msra.mxu0 0.0
    %295 = vmatprep.subr.mxu0 0.0
    %296 = vmatpush2.msra.mxu0 0.0
    %297 = vmatprep.subr.mxu0 0.0
    %298 = vmatpush2.msra.mxu0 0.0
    %299 = vmatprep.subr.mxu0 0.0
    %300 = vmatpush2.msra.mxu0 0.0
    %301 = vmatprep.mubr.f32.mxu0 0.0
    %302 = vmatmul.mubr.f32.gmra.mxu0 %v235
    %v303 = vpop.f32.mrf.mxu0
    %v304 = vadd.f32 0.0, %v303
    %v305 = vpop.f32.mrf.mxu0
    %306 = vdwg.mxu0
    %307 = vst [vmem:[#allocation8] sm:$0xf] %v304
    // Predicated region
    $region26: #{tpu_custom_call.1} parent=1 // pred_check
      _
    $region27: #{tpu_custom_call.1} parent=1 // pred_check_branch
      %309 = sbr.rel (0) target = $region29
    $region28: #{tpu_custom_call.1} parent=1 // pred_region
      %s311 = ssub.s32 512, 512
      %312 = vsyncadd [#allocation4], %s311
      %s313 = sshll.u32 [#allocation7], 4
      %s314 = int_to_ptr.vmem [resolvable:$true] %s313
      %319 = dma.vmem_to_hbm [thread:$0]  %s314, 512, %s4, [#allocation4], 128, 128, 8
    $region29: #{tpu_custom_call.1} parent=1 // pred_fallthru
      _
    // Predicated region
    $region30: #{tpu_custom_call.1} parent=1 // pred_check
      _
    $region31: #{tpu_custom_call.1} parent=1 // pred_check_branch
      %321 = sbr.rel (0) target = $region33
    $region32: #{tpu_custom_call.1} parent=1 // pred_region
      %s323 = ssub.s32 64, 64
      %324 = vsyncadd [#allocation9], %s323
      %s326 = sshll.u32 [#allocation8], 4
      %s327 = int_to_ptr.vmem [resolvable:$true] %s326
      %329 = dma.vmem_to_hbm [thread:$0]  %s327, 64, %s5, [#allocation9]
    $region33: #{tpu_custom_call.1} parent=1 // pred_fallthru
      _
    // Predicated region
    $region34: #{tpu_custom_call.1} parent=1 // pred_check
      _
    $region35: #{tpu_custom_call.1} parent=1 // pred_check_branch
      %331 = sbr.rel (0) target = $region37
    $region36: #{tpu_custom_call.1} parent=1 // pred_region
      %332 = dma.done [#allocation4], 512
    $region37: #{tpu_custom_call.1} parent=1 // pred_fallthru
      _
    // Predicated region
    $region38: #{tpu_custom_call.1} parent=1 // pred_check
      _
    $region39: #{tpu_custom_call.1} parent=1 // pred_check_branch
      %334 = sbr.rel (0) target = $region41
    $region40: #{tpu_custom_call.1} parent=1 // pred_region
      %335 = dma.done [#allocation9], 64
    $region41: #{tpu_custom_call.1} parent=1 // pred_fallthru
      _
    %336 = vsyncpa [#allocation3], 1
    %337 = vsyncpa [#allocation6], 1
    %338 = vsyncpa [#allocation4], 1
    %339 = vsyncpa [#allocation9], 1

</llo_original>
